<compile_context>
chip_gen: v6e
topology: v6e:2x2x1
jax: 0.10.0
libtpu: 0.0.40
codegen_flags: <defaults>
</compile_context>

<pallas_src>
import jax
import jax.numpy as jnp
from jax.experimental import pallas as pl
from jax.experimental.pallas import tpu as pltpu


SEP_TOKEN_ID = 3
PAD_TOKEN_ID = 0
BEAM_TOPN = 10
KEEP_CLS_LEVEL_OUTPUT = False      # -> offset = 1
INVERSE_SEGMENT_MASK = False
MASK_CLS = True

# dtype knobs (per perf review)
IO_DTYPE = jnp.bfloat16   # seq / start_reps / W1W2 / wee stream dtype (MXU-native bf16, f32 accum)
EUP_DTYPE = jnp.float32   # tanh / elementwise dtype.  TODO(synk): set jnp.bfloat16 on v6e/v7x
                          # (bf16 EUP/VPU ~2x); keep f32 on v5e (no bf16 EUP).


def _choose_s_tile(S, max_tile=256):
    """Largest S tile <= max_tile honoring the (8,128) lane constraint (multiple of 128 or == S)."""
    if S <= max_tile:
        return S
    for ts in (256, 128):
        if S % ts == 0:
            return ts
    return S   # TODO(synk): pad awkward sequence lengths to a multiple of 128.


# ----------------------------- Pallas kernels -----------------------------

def _start_logits_kernel(seq_ref, w0_ref, b0_ref, mask_ref, out_ref):
    # seq_ref: (1, TS, H)  w0_ref: (1, H)  b0_ref: SMEM (1,)  mask_ref: (1, 1, TS)  out_ref: (1, 1, TS)
    x = seq_ref[0]                                                         # [TS, H]
    # Contract H on both operands — no x.T (avoids XLU transpose + [H,TS] VMEM copy).
    s = jax.lax.dot_general(w0_ref[...], x,
                            dimension_numbers=(((1,), (1,)), ((), ())),
                            preferred_element_type=jnp.float32)            # [1, TS]
    s = s + b0_ref[0]
    m = mask_ref[0] != 0                                                   # [1, TS]
    out_ref[0] = jnp.where(m, -jnp.inf, s)                                 # lane-dense store


def _end_logits_kernel(seq_ref, srep_ref, wE_ref, be_ref, wee_ref, bee_ref,
                       mask_ref, out_ref, v_scr):
    # seq_ref: (1, TS, H)  srep_ref: (1, K, H)  wE_ref: (2H, H)  be_ref: (1, H)
    # wee_ref: (1, H)      bee_ref: SMEM (1,)   mask_ref: (1, 1, TS)  out_ref: (1, K, TS)
    # v_scr:   VMEM (K, H) f32 scratch holding start_reps @ W2.
    x = seq_ref[0]                                                         # [TS, H]  (IO_DTYPE)
    sr = srep_ref[0]                                                       # [K, H]
    Hd = x.shape[-1]
    K = sr.shape[0]

    # cat([seq, start_rep], -1) @ W_E  ==  seq @ W1 + start_rep @ W2  (exact split of the concat).
    w1 = wE_ref[0:Hd, :]                                                   # [H, H]
    w2 = wE_ref[Hd:2 * Hd, :]                                              # [H, H]
    u = (jnp.dot(x, w1, preferred_element_type=jnp.float32)
         + be_ref[...]).astype(EUP_DTYPE)                                  # [TS, H]
    v_scr[...] = jnp.dot(sr, w2, preferred_element_type=jnp.float32)       # [K, H]  (computed once)

    # Loop invariants hoisted (JAX does not CSE broadcast_in_dim).
    wee = wee_ref[...].astype(EUP_DTYPE)                                   # [1, H]
    bee = bee_ref[0]                                                       # scalar f32
    m = mask_ref[0] != 0                                                   # [1, TS]
    neg_inf = jnp.float32(-jnp.inf)

    def body(k, carry):
        v_k = v_scr[pl.ds(k, 1), :].astype(EUP_DTYPE)                      # [1, H]
        t_k = jnp.tanh(u + v_k)                                            # [TS, H]  (bounded live temp)
        e_k = jnp.sum(t_k * wee, axis=-1, dtype=jnp.float32)               # [TS]     (f32 accumulation)
        row = jnp.where(m, neg_inf, e_k[None, :] + bee)                    # [1, TS]
        out_ref[0, pl.ds(k, 1), :] = row                                   # lane-dense row store
        return carry

    jax.lax.fori_loop(0, K, body, 0, unroll=2)


# ----------------------------- pallas_call wrappers -----------------------------

def start_logits_pallas(seq, qa_w, qa_b, ctx_mask3, *, s_tile=None):
    B, S, H = seq.shape
    ts = _choose_s_tile(S) if s_tile is None else s_tile
    w0 = qa_w[:, 0].reshape(1, H)          # only the "start" column of qa_outputs is needed
    b0 = qa_b[0:1]                         # scalar bias via SMEM
    out = pl.pallas_call(
        _start_logits_kernel,
        out_shape=jax.ShapeDtypeStruct((B, 1, S), jnp.float32),
        grid=(B, S // ts),
        in_specs=[
            pl.BlockSpec((1, ts, H), lambda b, s: (b, s, 0)),
            pl.BlockSpec((1, H), lambda b, s: (0, 0), pipeline_mode=pl.Buffered(1)),
            pl.BlockSpec(memory_space=pltpu.MemorySpace.SMEM),
            pl.BlockSpec((1, 1, ts), lambda b, s: (b, 0, s)),
        ],
        out_specs=pl.BlockSpec((1, 1, ts), lambda b, s: (b, 0, s)),
        compiler_params=pltpu.CompilerParams(
            dimension_semantics=("parallel", "parallel")),
    )(seq, w0, b0, ctx_mask3)
    return out.reshape(B, S)               # free squeeze of the unit dim


def end_logits_pallas(seq, start_reps, aE_w, aE_b, aEE_w, aEE_b, ctx_mask3, *, s_tile=None):
    B, S, H = seq.shape
    K = start_reps.shape[1]
    ts = _choose_s_tile(S) if s_tile is None else s_tile

    seq_c = seq.astype(IO_DTYPE)
    sreps_c = start_reps.astype(IO_DTYPE)
    wE = aE_w.astype(IO_DTYPE)                         # single (2H, H) block, sliced in-kernel
    be = aE_b.reshape(1, H).astype(jnp.float32)
    wee = aEE_w.reshape(1, H).astype(IO_DTYPE)         # [H,1] column -> lane-dense row
    bee = aEE_b.reshape(1).astype(jnp.float32)         # scalar bias via SMEM

    return pl.pallas_call(
        _end_logits_kernel,
        out_shape=jax.ShapeDtypeStruct((B, K, S), jnp.float32),
        grid=(B, S // ts),
        in_specs=[
            pl.BlockSpec((1, ts, H), lambda b, s: (b, s, 0)),
            pl.BlockSpec((1, K, H), lambda b, s: (b, 0, 0)),
            # grid-invariant weights: single-buffered (no wasted double-buffer VMEM)
            pl.BlockSpec((2 * H, H), lambda b, s: (0, 0), pipeline_mode=pl.Buffered(1)),
            pl.BlockSpec((1, H), lambda b, s: (0, 0), pipeline_mode=pl.Buffered(1)),
            pl.BlockSpec((1, H), lambda b, s: (0, 0), pipeline_mode=pl.Buffered(1)),
            pl.BlockSpec(memory_space=pltpu.MemorySpace.SMEM),
            pl.BlockSpec((1, 1, ts), lambda b, s: (b, 0, s)),
        ],
        out_specs=pl.BlockSpec((1, K, ts), lambda b, s: (b, 0, s)),
        scratch_shapes=[pltpu.VMEM((K, H), jnp.float32)],
        compiler_params=pltpu.CompilerParams(
            dimension_semantics=("parallel", "parallel"),
            vmem_limit_bytes=40 * 1024 * 1024),        # explicit budget; fits v7x (64 MiB phys)
    )(seq_c, sreps_c, wE, be, wee, bee, ctx_mask3)


# ----------------------------- full forward (glue + kernels) -----------------------------

def forward(params, input_ids, token_type_ids, sequence_output_full):
    offset = int(not KEEP_CLS_LEVEL_OUTPUT)
    seq = sequence_output_full[:, offset:]                                 # [B, S, H]
    ids = input_ids[:, offset:]
    tt = token_type_ids[:, offset:]

    # context mask (glue: trivial integer elementwise)
    seg_mask = ~(tt.astype(bool)) if INVERSE_SEGMENT_MASK else tt.astype(bool)
    ctx_mask = seg_mask | (ids == SEP_TOKEN_ID)
    # mask_cls=True and a_starts is None -> no override of column 0
    ctx_mask3 = ctx_mask.astype(jnp.int32)[:, None, :]                     # [B, 1, S] lane-dense

    # start logits (qa_outputs column 0 + masking) in Pallas
    start_logits = start_logits_pallas(seq, params["qa_w"], params["qa_b"], ctx_mask3)

    # torch.topk -> jax.lax.top_k (glue); gather start representations (glue, [B,K,H] only)
    _, topk_idx = jax.lax.top_k(start_logits, BEAM_TOPN)                   # [B, K]
    start_reps = jnp.take_along_axis(seq, topk_idx[:, :, None], axis=1)    # [B, K, H]

    # conditional end logits (albertE -> tanh -> albertEE + masking) in Pallas
    end_logits = end_logits_pallas(seq, start_reps, params["aE_w"], params["aE_b"],
                                   params["aEE_w"], params["aEE_b"], ctx_mask3)
    return start_logits, end_logits, topk_idx


def reference(params, input_ids, token_type_ids, sequence_output_full, topk_idx=None):
    """Pure-JAX f32 reference mirroring the torch forward (a_starts=None branch).

    If topk_idx is given, the end logits are computed from those start positions (used to
    decouple the comparison from tie-ordering in top_k)."""
    offset = int(not KEEP_CLS_LEVEL_OUTPUT)
    seq = sequence_output_full[:, offset:]
    ids = input_ids[:, offset:]
    tt = token_type_ids[:, offset:]
    ctx = tt.astype(bool) | (ids == SEP_TOKEN_ID)

    logits = seq @ params["qa_w"] + params["qa_b"]
    start = jnp.where(ctx, -jnp.inf, logits[..., 0])
    if topk_idx is None:
        _, topk_idx = jax.lax.top_k(start, BEAM_TOPN)
    sreps = jnp.take_along_axis(seq, topk_idx[:, :, None], axis=1)         # [B, K, H]
    B, S, H = seq.shape
    combined = jnp.concatenate(
        [jnp.broadcast_to(seq[:, None], (B, BEAM_TOPN, S, H)),
         jnp.broadcast_to(sreps[:, :, None], (B, BEAM_TOPN, S, H))], axis=-1)
    h = jnp.tanh(combined @ params["aE_w"] + params["aE_b"])
    e = (h @ params["aEE_w"] + params["aEE_b"])[..., 0]
    e = jnp.where(ctx[:, None, :], -jnp.inf, e)
    return start, e, topk_idx


# ----------------------------- main -----------------------------

if __name__ == "__main__":
    B, S_FULL, H, V = 2, 17, 32, 64
    S = S_FULL - int(not KEEP_CLS_LEVEL_OUTPUT)

    key = jax.random.PRNGKey(0)
    k_emb, k_pos, k_qa, k_qb, k_aE, k_aEb, k_aEE, k_aEEb, k_ids = jax.random.split(key, 9)

    std = 0.25
    params = {
        "qa_w": std * jax.random.normal(k_qa, (H, 2), jnp.float32),
        "qa_b": std * jax.random.normal(k_qb, (2,), jnp.float32),
        "aE_w": std * jax.random.normal(k_aE, (2 * H, H), jnp.float32),
        "aE_b": std * jax.random.normal(k_aEb, (H,), jnp.float32),
        "aEE_w": std * jax.random.normal(k_aEE, (H, 1), jnp.float32),
        "aEE_b": std * jax.random.normal(k_aEEb, (1,), jnp.float32),
    }

    # deterministic example inputs
    input_ids = jax.random.randint(k_ids, (B, S_FULL), 4, V, dtype=jnp.int32)
    input_ids = input_ids.at[:, 0].set(2)                    # [CLS]-ish token
    input_ids = input_ids.at[:, 8].set(SEP_TOKEN_ID)         # SEP inside sequence
    input_ids = input_ids.at[:, -1].set(SEP_TOKEN_ID)        # trailing SEP
    token_type_ids = (jnp.arange(S_FULL)[None, :] > 8).astype(jnp.int32) * jnp.ones((B, 1), jnp.int32)

    # TODO(synk): pretrained BertModel stub — deterministic embedding encoder (plain JAX glue).
    emb_table = std * jax.random.normal(k_emb, (V, H), jnp.float32)
    pos_table = std * jax.random.normal(k_pos, (S_FULL, H), jnp.float32)
    sequence_output_full = jnp.tanh(emb_table[input_ids] + pos_table[None])  # [B, S_FULL, H]

    start_logits, end_logits, topk_idx = forward(params, input_ids, token_type_ids, sequence_output_full)
    jax.block_until_ready((start_logits, end_logits, topk_idx))

    # Reference: start logits + topk from its own f32 math; end logits re-computed with the
    # Pallas topk indices so tie-ordering cannot make the comparison flaky (per review).
    ref_start, _, _ = reference(params, input_ids, token_type_ids, sequence_output_full)
    _, ref_end, _ = reference(params, input_ids, token_type_ids, sequence_output_full, topk_idx=topk_idx)

    assert start_logits.shape == (B, S)
    assert end_logits.shape == (B, BEAM_TOPN, S)
    assert topk_idx.shape == (B, BEAM_TOPN)

    # start logits: both f32 -> tight tolerance
    assert jnp.allclose(start_logits, ref_start, rtol=1e-5, atol=1e-4)
    # top-k checked by gathered values (index order among -inf ties may legitimately differ)
    vals_pallas = jnp.take_along_axis(start_logits, topk_idx, axis=1)
    vals_ref, _ = jax.lax.top_k(ref_start, BEAM_TOPN)
    assert jnp.allclose(vals_pallas, vals_ref, rtol=1e-5, atol=1e-4)
    # end logits: bf16 matmul inputs -> looser tolerance
    assert jnp.allclose(end_logits, ref_end, rtol=5e-2, atol=5e-2)

    print("KERNEL_OK")
</pallas_src>

<mosaic_0001>
module attributes {stable_mosaic.version = 11 : i64} {
  func.func @_start_logits_kernel(%arg0: i32, %arg1: i32, %arg2: memref<1x16x32xf32, #tpu.memory_space<vmem>>, %arg3: memref<1x32xf32, #tpu.memory_space<vmem>>, %arg4: memref<1xf32, #tpu.memory_space<smem>>, %arg5: memref<1x1x16xi32, #tpu.memory_space<vmem>>, %arg6: memref<1x1x16xf32, #tpu.memory_space<vmem>>) attributes {dimension_semantics = [#tpu.dimension_semantics<parallel>, #tpu.dimension_semantics<parallel>], iteration_bounds = array<i64: 2, 1>, scalar_prefetch = 0 : i64, scratch_operands = 0 : i64, tpu.core_type = #tpu.core_type<tc>, window_params = [{transform_indices = @transform_0, window_bounds = array<i64: 1, 16, 32>}, {pipeline_mode = #tpu.pipeline_mode<synchronous>, transform_indices = @transform_1, window_bounds = array<i64: 1, 32>}, {transform_indices = @transform_2, window_bounds = array<i64: 1>}, {transform_indices = @transform_3, window_bounds = array<i64: 1, 1, 16>}, {transform_indices = @transform_4, window_bounds = array<i64: 1, 1, 16>}]} {
    %c0 = arith.constant 0 : index
    %c0_0 = arith.constant 0 : index
    %c0_1 = arith.constant 0 : index
    %0 = vector.load %arg2[%c0, %c0_0, %c0_1] : memref<1x16x32xf32, #tpu.memory_space<vmem>>, vector<1x16x32xf32>
    %1 = vector.shape_cast %0 : vector<1x16x32xf32> to vector<16x32xf32>
    %c0_2 = arith.constant 0 : index
    %c0_3 = arith.constant 0 : index
    %2 = vector.load %arg3[%c0_2, %c0_3] : memref<1x32xf32, #tpu.memory_space<vmem>>, vector<1x32xf32>
    %cst = arith.constant dense<0.000000e+00> : vector<1x16xf32>
    %3 = tpu.matmul %2, %1, %cst {dimension_numbers = #tpu.dot_dimension_numbers<[1], [1], [0], [0], [0, 0, 1, 0], [], []>} : vector<1x32xf32>, vector<16x32xf32>, vector<1x16xf32> -> vector<1x16xf32>
    %c0_4 = arith.constant 0 : index
    %4 = memref.load %arg4[%c0_4] : memref<1xf32, #tpu.memory_space<smem>>
    %5 = vector.broadcast %4 : f32 to vector<1x16xf32>
    %6 = arith.addf %3, %5 : vector<1x16xf32>
    %c0_5 = arith.constant 0 : index
    %c0_6 = arith.constant 0 : index
    %c0_7 = arith.constant 0 : index
    %7 = vector.load %arg5[%c0_5, %c0_6, %c0_7] : memref<1x1x16xi32, #tpu.memory_space<vmem>>, vector<1x1x16xi32>
    %8 = vector.shape_cast %7 : vector<1x1x16xi32> to vector<1x16xi32>
    %c0_i32 = arith.constant 0 : i32
    %9 = vector.broadcast %c0_i32 : i32 to vector<1x16xi32>
    %10 = arith.cmpi ne, %8, %9 : vector<1x16xi32>
    %cst_8 = arith.constant 0xFF800000 : f32
    %11 = vector.broadcast %cst_8 : f32 to vector<1x16xf32>
    %12 = arith.select %10, %11, %6 : vector<1x16xi1>, vector<1x16xf32>
    %c0_9 = arith.constant 0 : index
    %c0_10 = arith.constant 0 : index
    %c0_11 = arith.constant 0 : index
    %13 = vector.load %arg6[%c0_9, %c0_10, %c0_11] : memref<1x1x16xf32, #tpu.memory_space<vmem>>, vector<1x1x16xf32>
    %14 = vector.shape_cast %13 : vector<1x1x16xf32> to vector<1x16xf32>
    %15 = vector.shape_cast %12 : vector<1x16xf32> to vector<1x1x16xf32>
    tpu.vector_store %arg6[%c0_9, %c0_10, %c0_11], %15 {strides = array<i32>} : memref<1x1x16xf32, #tpu.memory_space<vmem>>, vector<1x1x16xf32>,
    return
  }
  func.func @transform_0(%arg0: i32, %arg1: i32) -> (i32, i32, i32) {
    %c0_i32 = arith.constant 0 : i32
    %c0_i32_0 = arith.constant 0 : i32
    return %arg0, %arg1, %c0_i32 : i32, i32, i32
  }
  func.func @transform_1(%arg0: i32, %arg1: i32) -> (i32, i32) {
    %c0_i32 = arith.constant 0 : i32
    %c0_i32_0 = arith.constant 0 : i32
    %c0_i32_1 = arith.constant 0 : i32
    return %c0_i32, %c0_i32_0 : i32, i32
  }
  func.func @transform_2(%arg0: i32, %arg1: i32) -> i32 {
    %c0_i32 = arith.constant 0 : i32
    %c0_i32_0 = arith.constant 0 : i32
    return %c0_i32 : i32
  }
  func.func @transform_3(%arg0: i32, %arg1: i32) -> (i32, i32, i32) {
    %c0_i32 = arith.constant 0 : i32
    %c0_i32_0 = arith.constant 0 : i32
    return %arg0, %c0_i32, %arg1 : i32, i32, i32
  }
  func.func @transform_4(%arg0: i32, %arg1: i32) -> (i32, i32, i32) {
    %c0_i32 = arith.constant 0 : i32
    %c0_i32_0 = arith.constant 0 : i32
    return %arg0, %c0_i32, %arg1 : i32, i32, i32
  }
}

</mosaic_0001>

<llo_original>
// kernel: tpu_custom_call.1
$region0: #{tpu_custom_call.1}
  #allocation0 [shape = 'u32[]', space=smem, size = 0x4, offset = 0x4, fixed_abs, tag = 'smem constant byte address 0x4 - core index']
  #allocation1 [shape = 'u32[144,128]{1,0:T(1,128)}', space=vmem, size = 0x12000, scoped, tag = 'internal scratch']
  #allocation2 [shape = 'f32[1]{0:T(128)S(6)}', space=smem, size = 0x200, scoped, tag = 'scoped memory for tpu_custom_call.1']
  %s0 = inlined_call_operand.hbm [shape: f32[2,16,32], index: 0, kind: input, shape index: {}]
  %s1 = inlined_call_operand.vmem [shape: f32[1,32], index: 1, kind: input, shape index: {}]
  %s2 = inlined_call_operand.<no memory space> [shape: f32[1], index: 2, kind: input, shape index: {}]
  %s3 = inlined_call_operand.vmem [shape: s32[2,1,16], index: 3, kind: input, shape index: {}]
  %s4 = inlined_call_operand.hbm [shape: f32[2,1,16], index: 4, kind: output, shape index: {}]
  %s5 = sld [smem:[#allocation0]]
  $region53: #{tpu_custom_call.1} parent=0
    _
  %s7 = ssub.s32 1, %s5
  %s8 = scalar_select 0, %s7, %s5
  %9 = sst [smem:[#allocation2]] %s2
  $region1: #{tpu_custom_call.1} parent=0
    #allocation3 [shape = 'u8[16384]{0}', space=vmem, size = 0x4000, scoped, tag = 'input window, operand 0']
    #allocation4 [shape = 's32[2]{0}', space=sflag, size = 0x8, scoped, tag = 'scoped memory for tpu_custom_call.1']
    #allocation5 [shape = 's32[2]{0}', space=sflag, size = 0x8, scoped, tag = 'scoped memory for tpu_custom_call.1']
    #allocation6 [shape = 'u8[1024]{0}', space=vmem, size = 0x400, scoped, tag = 'output window, operand 0']
    %10 = vsyncpa [#allocation4], 0
    %s11 = scalar_lea.sflag [#allocation4], 1
    %12 = vsyncpa %s11, 0
    %13 = vsyncpa [#allocation5], 0
    %s14 = scalar_lea.sflag [#allocation5], 1
    %15 = vsyncpa %s14, 0
    loop: start=0, step=1, limit=4
    $region2: #{tpu_custom_call.1} parent=1 // loop_pre_header
      _
    $region3: #{tpu_custom_call.1} parent=1 // loop_header
      %s17 = sphi 0, %s21
      %p18 = scmp.ge.s32.totalorder %s17, 4
      %s24 = sphi 0, %s36
      %s25 = sphi 0, %s32
      %s26 = sphi 0, %s24
      %s27 = sphi 0, %s25
      %s28 = sphi 0, %s26
      %s29 = sphi 0, %s27
      %s41 = sphi 0, %s43
      %s44 = sphi 0, %s41
      %s45 = sphi 0, %s44
      %s61 = sphi 0, %s45
      %s65 = sphi 0, %s65
      %s67 = sphi 0, %s65
      %s68 = sphi 0, %s67
      %s82 = sphi 0, %s68
      %s86 = sphi 0, %s86
      %s88 = sphi 0, %s86
      %s89 = sphi 0, %s88
      %s103 = sphi 0, %s89
      %s111 = sphi 0, %s113
      %s114 = sphi 0, %s111
      %s115 = sphi 0, %s114
      %s131 = sphi 0, %s115
      %s139 = sphi 0, %s141
      %s142 = sphi 0, %s139
      %s143 = sphi 0, %s142
      %s159 = sphi 0, %s143
    $region4: #{tpu_custom_call.1} parent=1 // loop_header_branch
      %20 = sbr.rel (%p18) target = $region8
    $region5: #{tpu_custom_call.1} parent=1 // loop_body
      %s22 = ssub.s32 %s17, 1
      %s23 = ssub.s32 %s17, 2
      %s30 = sadd.s32 1, %s25
      %p31 = scmp.ge.s32.totalorder %s30, 1
      %s32 = scalar_select %p31, 0, %s30
      %s33 = sadd.s32 1, %s24
      %s34 = scalar_select %p31, %s33, %s24
      %p35 = scmp.ge.s32.totalorder %s34, 2
      %s36 = scalar_select %p35, 0, %s34
      %s37 = ssub.s32 %s24, %s36
      %s38 = ssub.s32 %s25, %s32
      %s39 = sor.u32 %s37, %s38
      %p40 = scmp.eq.s32.totalorder %s39, 0
      %s42 = sadd.s32 %s41, 1
      %s43 = scalar_select %p40, %s41, %s42
      %p46 = pneg %p40
      %p47 = scmp.eq.s32.totalorder %s17, 1
      %p48 = por %p46, %p47
      %p49 = scmp.ne.s32.totalorder %s41, %s44
      %p50 = scmp.eq.s32.totalorder %s17, 0
      %p51 = por %p49, %p50
      %p52 = scmp.ne.s32.totalorder %s41, %s44
      %p53 = scmp.eq.s32.totalorder %s22, 1
      %p54 = por %p52, %p53
      %p55 = scmp.ne.s32.totalorder %s44, %s45
      %p56 = scmp.eq.s32.totalorder %s22, 0
      %p57 = por %p55, %p56
      %p58 = scmp.ne.s32.totalorder %s44, %s45
      %p59 = scmp.eq.s32.totalorder %s23, 1
      %p60 = por %p58, %p59
      %p62 = scmp.ne.s32.totalorder %s45, %s61
      %p63 = scmp.eq.s32.totalorder %s23, 0
      %p64 = por %p62, %p63
      %s66 = sadd.s32 %s65, 1
      %p69 = scmp.eq.s32.totalorder %s17, 1
      %p70 = scmp.ne.s32.totalorder %s65, %s67
      %p71 = scmp.eq.s32.totalorder %s17, 0
      %p72 = por %p70, %p71
      %p73 = scmp.ne.s32.totalorder %s65, %s67
      %p74 = scmp.eq.s32.totalorder %s22, 1
      %p75 = por %p73, %p74
      %p76 = scmp.ne.s32.totalorder %s67, %s68
      %p77 = scmp.eq.s32.totalorder %s22, 0
      %p78 = por %p76, %p77
      %p79 = scmp.ne.s32.totalorder %s67, %s68
      %p80 = scmp.eq.s32.totalorder %s23, 1
      %p81 = por %p79, %p80
      %p83 = scmp.ne.s32.totalorder %s68, %s82
      %p84 = scmp.eq.s32.totalorder %s23, 0
      %p85 = por %p83, %p84
      %s87 = sadd.s32 %s86, 1
      %p90 = scmp.eq.s32.totalorder %s17, 1
      %p91 = scmp.ne.s32.totalorder %s86, %s88
      %p92 = scmp.eq.s32.totalorder %s17, 0
      %p93 = por %p91, %p92
      %p94 = scmp.ne.s32.totalorder %s86, %s88
      %p95 = scmp.eq.s32.totalorder %s22, 1
      %p96 = por %p94, %p95
      %p97 = scmp.ne.s32.totalorder %s88, %s89
      %p98 = scmp.eq.s32.totalorder %s22, 0
      %p99 = por %p97, %p98
      %p100 = scmp.ne.s32.totalorder %s88, %s89
      %p101 = scmp.eq.s32.totalorder %s23, 1
      %p102 = por %p100, %p101
      %p104 = scmp.ne.s32.totalorder %s89, %s103
      %p105 = scmp.eq.s32.totalorder %s23, 0
      %p106 = por %p104, %p105
      %s107 = ssub.s32 %s24, %s36
      %s108 = ssub.s32 %s25, %s32
      %s109 = sor.u32 %s107, %s108
      %p110 = scmp.eq.s32.totalorder %s109, 0
      %s112 = sadd.s32 %s111, 1
      %s113 = scalar_select %p110, %s111, %s112
      %p116 = pneg %p110
      %p117 = scmp.eq.s32.totalorder %s17, 1
      %p118 = por %p116, %p117
      %p119 = scmp.ne.s32.totalorder %s111, %s114
      %p120 = scmp.eq.s32.totalorder %s17, 0
      %p121 = por %p119, %p120
      %p122 = scmp.ne.s32.totalorder %s111, %s114
      %p123 = scmp.eq.s32.totalorder %s22, 1
      %p124 = por %p122, %p123
      %p125 = scmp.ne.s32.totalorder %s114, %s115
      %p126 = scmp.eq.s32.totalorder %s22, 0
      %p127 = por %p125, %p126
      %p128 = scmp.ne.s32.totalorder %s114, %s115
      %p129 = scmp.eq.s32.totalorder %s23, 1
      %p130 = por %p128, %p129
      %p132 = scmp.ne.s32.totalorder %s115, %s131
      %p133 = scmp.eq.s32.totalorder %s23, 0
      %p134 = por %p132, %p133
      %s135 = ssub.s32 %s24, %s36
      %s136 = ssub.s32 %s25, %s32
      %s137 = sor.u32 %s135, %s136
      %p138 = scmp.eq.s32.totalorder %s137, 0
      %s140 = sadd.s32 %s139, 1
      %s141 = scalar_select %p138, %s139, %s140
      %p144 = pneg %p138
      %p145 = scmp.eq.s32.totalorder %s17, 1
      %p146 = por %p144, %p145
      %p147 = scmp.ne.s32.totalorder %s139, %s142
      %p148 = scmp.eq.s32.totalorder %s17, 0
      %p149 = por %p147, %p148
      %p150 = scmp.ne.s32.totalorder %s139, %s142
      %p151 = scmp.eq.s32.totalorder %s22, 1
      %p152 = por %p150, %p151
      %p153 = scmp.ne.s32.totalorder %s142, %s143
      %p154 = scmp.eq.s32.totalorder %s22, 0
      %p155 = por %p153, %p154
      %p156 = scmp.ne.s32.totalorder %s142, %s143
      %p157 = scmp.eq.s32.totalorder %s23, 1
      %p158 = por %p156, %p157
      %p160 = scmp.ne.s32.totalorder %s143, %s159
      %p161 = scmp.eq.s32.totalorder %s23, 0
      %p162 = por %p160, %p161
      %p163 = scmp.le.s32.totalorder 1, %s17
      %p164 = scmp.lt.s32.totalorder %s17, 3
      %p165 = pnand %p163, %p164
      %p166 = pneg %p165
      // Predicated region
      $region9: #{tpu_custom_call.1} parent=5 // pred_check
        _
      $region10: #{tpu_custom_call.1} parent=5 // pred_check_branch
        %168 = sbr.rel (%p165) target = $region12
      $region11: #{tpu_custom_call.1} parent=5 // pred_region
        %s169 = ssub.s32 %s17, 1
        // Predicated region
        $region13: #{tpu_custom_call.1} parent=11 // pred_check
          %p170 = pneg %p78
        $region14: #{tpu_custom_call.1} parent=11 // pred_check_branch
          %172 = sbr.rel (%p170) target = $region16
        $region15: #{tpu_custom_call.1} parent=11 // pred_region
          _
        $region16: #{tpu_custom_call.1} parent=11 // pred_fallthru
          _
        // Predicated region
        $region17: #{tpu_custom_call.1} parent=11 // pred_check
          %p173 = pneg %p99
        $region18: #{tpu_custom_call.1} parent=11 // pred_check_branch
          %175 = sbr.rel (%p173) target = $region20
        $region19: #{tpu_custom_call.1} parent=11 // pred_region
          _
        $region20: #{tpu_custom_call.1} parent=11 // pred_fallthru
          _
      $region12: #{tpu_custom_call.1} parent=5 // pred_fallthru
        _
      %p176 = scmp.lt.s32.totalorder %s17, 2
      // Predicated region
      $region21: #{tpu_custom_call.1} parent=5 // pred_check
        %p177 = pneg %p176
      $region22: #{tpu_custom_call.1} parent=5 // pred_check_branch
        %179 = sbr.rel (%p177) target = $region24
      $region23: #{tpu_custom_call.1} parent=5 // pred_region
        // Predicated region
        $region25: #{tpu_custom_call.1} parent=23 // pred_check
          %p180 = pneg %p51
        $region26: #{tpu_custom_call.1} parent=23 // pred_check_branch
          %182 = sbr.rel (%p180) target = $region28
        $region27: #{tpu_custom_call.1} parent=23 // pred_region
          %s183 = sand.u32 %s41, 1
          %s184 = scalar_lea.sflag [#allocation4], %s183
          %s185 = sand.u32 %s41, 1
          %s186 = smul.addr %s185, 16
          %s187 = scalar_lea.vmem [#allocation3], %s186
          %s188 = smul.u32 2, %s25
          %s190 = ssub.s32 256, 256
          %191 = vsyncadd %s184, %s190
          %s192 = smul.addr %s24, 2
          %s193 = sadd.s32 %s188, %s192
          %s194 = smul.addr %s193, 128
          %s195 = scalar_lea.hbm %s0, %s194
          %s196 = sshll.u32 %s187, 4
          %s197 = int_to_ptr.vmem [resolvable:$true] %s196
          %202 = dma.hbm_to_vmem [thread:$0]  %s195, 256, %s197, %s184, 128, 128, 8
        $region28: #{tpu_custom_call.1} parent=23 // pred_fallthru
          _
        // Predicated region
        $region29: #{tpu_custom_call.1} parent=23 // pred_check
          %p203 = pneg %p121
        $region30: #{tpu_custom_call.1} parent=23 // pred_check_branch
          %205 = sbr.rel (%p203) target = $region32
        $region31: #{tpu_custom_call.1} parent=23 // pred_region
          %p206 = scmp.lt.s32.totalorder %s24, 1
          %s207 = scalar_select %p206, %s24, 1
          %p208 = scmp.lt.s32.totalorder %s25, 0
          %s209 = scalar_select %p208, %s25, 0
          %s210 = sadd.s32 %s209, %s207
          %s211 = scalar_lea.vmem %s3, %s210
        $region32: #{tpu_custom_call.1} parent=23 // pred_fallthru
          _
      $region24: #{tpu_custom_call.1} parent=5 // pred_fallthru
        _
      %p212 = scmp.le.s32.totalorder 1, %s17
      %p213 = scmp.lt.s32.totalorder %s17, 3
      %p214 = pnand %p212, %p213
      %p215 = pneg %p214
      // Predicated region
      $region33: #{tpu_custom_call.1} parent=5 // pred_check
        _
      $region34: #{tpu_custom_call.1} parent=5 // pred_check_branch
        %217 = sbr.rel (%p214) target = $region36
      $region35: #{tpu_custom_call.1} parent=5 // pred_region
        %s218 = ssub.s32 %s17, 1
        %s219 = sand.u32 %s44, 1
        %s220 = scalar_lea.sflag [#allocation4], %s219
        %s221 = sand.u32 %s44, 1
        %s222 = smul.addr %s221, 16
        %s223 = scalar_lea.vmem [#allocation3], %s222
        // Predicated region
        $region37: #{tpu_custom_call.1} parent=35 // pred_check
          %p224 = pneg %p57
        $region38: #{tpu_custom_call.1} parent=35 // pred_check_branch
          %226 = sbr.rel (%p224) target = $region40
        $region39: #{tpu_custom_call.1} parent=35 // pred_region
          %227 = dma.done %s220, 256
        $region40: #{tpu_custom_call.1} parent=35 // pred_fallthru
          _
        %s228 = sand.u32 %s44, 1
        %s229 = scalar_lea.sflag [#allocation4], %s228
        %s230 = sand.u32 %s44, 1
        %s231 = smul.addr %s230, 16
        %s232 = scalar_lea.vmem [#allocation3], %s231
        %p233 = pneg %p57
        %p234 = pneg %p54
        %p235 = pneg %p78
        %p236 = pneg %p75
        %p237 = pneg %p99
        %p238 = pneg %p96
        %p239 = scmp.lt.s32.totalorder %s26, 1
        %s240 = scalar_select %p239, %s26, 1
        %p241 = scmp.lt.s32.totalorder %s27, 0
        %s242 = scalar_select %p241, %s27, 0
        %s243 = sadd.s32 %s242, %s240
        %s244 = scalar_lea.vmem %s3, %s243
        %p245 = pneg %p127
        %p246 = pneg %p124
        %p247 = pneg %p155
        %p248 = pneg %p152
        %s249 = sand.u32 %s142, 1
        %s250 = scalar_lea.sflag [#allocation5], %s249
        %s251 = sand.u32 %s142, 1
        %s252 = scalar_lea.vmem [#allocation6], %s251
        %s253 = smul.u32 2, %s27
        %p254 = scmp.lt.s32.totalorder %s26, 1
        %s255 = scalar_select %p254, %s26, 1
        %p256 = scmp.lt.s32.totalorder %s27, 0
        %s257 = scalar_select %p256, %s27, 0
        %s258 = sadd.s32 %s257, %s255
        %s259 = scalar_lea.vmem %s3, %s258
        %v260 = vld [vmem:[%s223] sm:$0xff]
        %v261 = vld [vmem:[%s223 + $0x8] sm:$0xff]
        %v262 = vld [vmem:[%s1] sm:$0x1]
        %s263 = sld [smem:[#allocation2]]
        %v264 = vstv %s263
        %vm265 = vcmask 261120
        %v267 = vsel %vm265, %v262, 0
        %v270 = vsel %vm265, %v260, 0
        %v273 = vsel %vm265, %v261, 0
        %275 = vmatprep.subr.mxu0 0.0
        %276 = vmatpush1.xpose.msra.mxu0 0.0
        %277 = vmatprep.subr.mxu0 0.0
        %278 = vmatpush1.xpose.msra.mxu0 0.0
        %279 = vmatprep.subr.mxu0 0.0
        %280 = vmatpush1.xpose.msra.mxu0 0.0
        %281 = vmatprep.subr.mxu0 0.0
        %282 = vmatpush1.xpose.msra.mxu0 0.0
        %283 = vmatprep.subr.mxu0 0.0
        %284 = vmatpush1.xpose.msra.mxu0 0.0
        %285 = vmatprep.subr.mxu0 0.0
        %286 = vmatpush1.xpose.msra.mxu0 0.0
        %287 = vmatprep.subr.mxu0 0.0
        %288 = vmatpush1.xpose.msra.mxu0 0.0
        %289 = vmatprep.subr.mxu0 0.0
        %290 = vmatpush1.xpose.msra.mxu0 0.0
        %291 = vmatprep.subr.mxu0 0.0
        %292 = vmatpush1.xpose.msra.mxu0 0.0
        %293 = vmatprep.subr.mxu0 0.0
        %294 = vmatpush1.xpose.msra.mxu0 0.0
        %295 = vmatprep.subr.mxu0 0.0
        %296 = vmatpush1.xpose.msra.mxu0 0.0
        %297 = vmatprep.subr.mxu0 0.0
        %298 = vmatpush1.xpose.msra.mxu0 0.0
        %299 = vmatprep.subr.mxu0 0.0
        %300 = vmatpush1.xpose.msra.mxu0 0.0
        %301 = vmatprep.subr.mxu0 0.0
        %302 = vmatpush1.xpose.msra.mxu0 0.0
        %303 = vmatprep.subr.mxu0 0.0
        %304 = vmatpush1.xpose.msra.mxu0 %v273
        %305 = vmatprep.subr.mxu0 0.0
        %306 = vmatpush1.xpose.msra.mxu0 %v270
        %307 = vmatprep.subr.mxu0 0.0
        %308 = vmatpush2.xpose.msra.mxu0 0.0
        %309 = vmatprep.subr.mxu0 0.0
        %310 = vmatpush2.xpose.msra.mxu0 0.0
        %311 = vmatprep.subr.mxu0 0.0
        %312 = vmatpush2.xpose.msra.mxu0 0.0
        %313 = vmatprep.subr.mxu0 0.0
        %314 = vmatpush2.xpose.msra.mxu0 0.0
        %315 = vmatprep.subr.mxu0 0.0
        %316 = vmatpush2.xpose.msra.mxu0 0.0
        %317 = vmatprep.subr.mxu0 0.0
        %318 = vmatpush2.xpose.msra.mxu0 0.0
        %319 = vmatprep.subr.mxu0 0.0
        %320 = vmatpush2.xpose.msra.mxu0 0.0
        %321 = vmatprep.subr.mxu0 0.0
        %322 = vmatpush2.xpose.msra.mxu0 0.0
        %323 = vmatprep.subr.mxu0 0.0
        %324 = vmatpush2.xpose.msra.mxu0 0.0
        %325 = vmatprep.subr.mxu0 0.0
        %326 = vmatpush2.xpose.msra.mxu0 0.0
        %327 = vmatprep.subr.mxu0 0.0
        %328 = vmatpush2.xpose.msra.mxu0 0.0
        %329 = vmatprep.subr.mxu0 0.0
        %330 = vmatpush2.xpose.msra.mxu0 0.0
        %331 = vmatprep.subr.mxu0 0.0
        %332 = vmatpush2.xpose.msra.mxu0 0.0
        %333 = vmatprep.subr.mxu0 0.0
        %334 = vmatpush2.xpose.msra.mxu0 0.0
        %335 = vmatprep.subr.mxu0 0.0
        %336 = vmatpush2.xpose.msra.mxu0 0.0
        %337 = vmatprep.subr.mxu0 0.0
        %338 = vmatpush2.xpose.msra.mxu0 0.0
        %339 = vmatprep.mubr.f32.mxu0 0.0
        %340 = vmatmul.mubr.f32.gmra.mxu0 %v267
        %v341 = vpop.f32.mrf.mxu0
        %v342 = vadd.f32 %v264, %v341
        %v343 = vpop.f32.mrf.mxu0
        %344 = vdwg.mxu0
        %v345 = vld [vmem:[%s259] sm:$0x1]
        %vm346 = vcmp.ne.s32.totalorder %v345, 0
        %v347 = vsel %vm346, -inf, %v342
        %vm348 = vcmask 122880
        %349 = vst.msk [vmem:[%s252] sm:$0x1] %vm348, %v347
        %s350 = sand.u32 %s142, 1
        %s351 = scalar_lea.sflag [#allocation5], %s350
        %s352 = sand.u32 %s142, 1
        %s353 = scalar_lea.vmem [#allocation6], %s352
        // Predicated region
        $region41: #{tpu_custom_call.1} parent=35 // pred_check
          %p354 = pneg %p152
        $region42: #{tpu_custom_call.1} parent=35 // pred_check_branch
          %356 = sbr.rel (%p354) target = $region44
        $region43: #{tpu_custom_call.1} parent=35 // pred_region
          %s358 = ssub.s32 16, 16
          %359 = vsyncadd %s351, %s358
          %s360 = sadd.s32 %s27, %s26
          %s361 = smul.addr %s360, 16
          %s362 = scalar_lea.hbm %s4, %s361
          %s364 = sshll.u32 %s353, 4
          %s365 = int_to_ptr.vmem [resolvable:$true] %s364
          %367 = dma.vmem_to_hbm [thread:$0]  %s365, 16, %s362, %s351
        $region44: #{tpu_custom_call.1} parent=35 // pred_fallthru
          _
      $region36: #{tpu_custom_call.1} parent=5 // pred_fallthru
        _
      %p368 = scmp.le.s32.totalorder 2, %s17
      // Predicated region
      $region45: #{tpu_custom_call.1} parent=5 // pred_check
        %p369 = pneg %p368
      $region46: #{tpu_custom_call.1} parent=5 // pred_check_branch
        %371 = sbr.rel (%p369) target = $region48
      $region47: #{tpu_custom_call.1} parent=5 // pred_region
        %s372 = ssub.s32 %s17, 2
        // Predicated region
        $region49: #{tpu_custom_call.1} parent=47 // pred_check
          %p373 = pneg %p158
        $region50: #{tpu_custom_call.1} parent=47 // pred_check_branch
          %375 = sbr.rel (%p373) target = $region52
        $region51: #{tpu_custom_call.1} parent=47 // pred_region
          %s376 = sand.u32 %s143, 1
          %s377 = scalar_lea.sflag [#allocation5], %s376
          %s378 = sand.u32 %s143, 1
          %s379 = scalar_lea.vmem [#allocation6], %s378
          %380 = dma.done %s377, 16
        $region52: #{tpu_custom_call.1} parent=47 // pred_fallthru
          _
      $region48: #{tpu_custom_call.1} parent=5 // pred_fallthru
        _
    $region6: #{tpu_custom_call.1} parent=1 // loop_footer
      %s21 = sadd.s32 1, %s17
    $region7: #{tpu_custom_call.1} parent=1 // loop_footer_branch
      %16 = sbr.rel target = $region3
    $region8: #{tpu_custom_call.1} parent=1 // loop_exit
      _
    %381 = vsyncpa [#allocation4], 1
    %s382 = scalar_lea.sflag [#allocation4], 1
    %383 = vsyncpa %s382, 1
    %384 = vsyncpa [#allocation5], 1
    %s385 = scalar_lea.sflag [#allocation5], 1
    %386 = vsyncpa %s385, 1

</llo_original>
